<compile_context>
chip_gen: v7x
topology: tpu7x:2x2x1
jax: 0.10.0
libtpu: 0.0.40
codegen_flags: <defaults>
</compile_context>

<pallas_src>
import jax
import jax.numpy as jnp
from jax.experimental import pallas as pl
from jax.experimental.pallas import tpu as pltpu

_MiB = 1024 * 1024


def _round_up(x, m):
    return (x + m - 1) // m * m


# ---------------------------------------------------------------------------
# Kernel
# ---------------------------------------------------------------------------
def _swiglu_kernel(x_ref, wg_ref, w3_ref, o_ref, acc_ref):
    # grid = (M tiles, I tiles); the I (reduction) axis is last and "arbitrary".
    j = pl.program_id(1)

    @pl.when(j == 0)
    def _init():
        acc_ref[...] = jnp.zeros_like(acc_ref)

    ti = wg_ref.shape[1] // 2  # static per-tile intermediate width

    # Cast activations to the weights' compute dtype in-kernel (free VPU filler
    # under the MXU) instead of a separate host-side pass over HBM.
    x = x_ref[...].astype(wg_ref.dtype)

    # Fused up-projection: one MXU matmul producing [h1 | h2] for this I tile.
    h = jnp.dot(x, wg_ref[...], preferred_element_type=jnp.float32)
    h1 = h[:, :ti]
    h2 = h[:, ti:]

    # SiLU gate in f32: sigmoid lands in the EUP slot, the multiplies in VPU slack.
    g = (h1 * jax.nn.sigmoid(h1)) * h2

    # Partial down-projection for this I tile, accumulated in f32.
    acc_ref[...] += jnp.dot(g.astype(w3_ref.dtype), w3_ref[...],
                            preferred_element_type=jnp.float32)

    @pl.when(j == pl.num_programs(1) - 1)
    def _finalize():
        o_ref[...] = acc_ref[...].astype(o_ref.dtype)


# ---------------------------------------------------------------------------
# Generation-aware tiling defaults
# ---------------------------------------------------------------------------
def _tpu_vmem_bytes():
    try:
        return int(pltpu.get_tpu_info().vmem_capacity_bytes)
    except Exception:
        return 128 * _MiB  # v5e/v6e default if the query is unavailable


def _generation_tiling():
    phys = _tpu_vmem_bytes()
    if phys <= 64 * _MiB:
        # v7x: 64 MiB/TC physical — cap the scoped VMEM limit well below it so
        # compiler internal scratch + Pallas double buffers keep headroom.
        return dict(vmem_limit=min(48 * _MiB, int(phys * 0.75)),
                    tm_target=512, ti_target=256,
                    two_core=(phys == 64 * _MiB))
    # v5e / v6e: 128 MiB physical. Weights are re-streamed once per M tile, so
    # tm must clear the HBM/MXU crossover (~650 FLOPs/byte on v6e): use 512.
    return dict(vmem_limit=96 * _MiB, tm_target=512, ti_target=512,
                two_core=False)


def _vmem_block_bytes(tm, ti, C, x_dtype, w_dtype, out_dtype):
    """Approximate VMEM footprint: double-buffered blocks + f32 accumulator."""
    xb = 2 * tm * C * jnp.dtype(x_dtype).itemsize
    wgb = 2 * C * 2 * ti * jnp.dtype(w_dtype).itemsize
    w3b = 2 * ti * C * jnp.dtype(w_dtype).itemsize
    ob = 2 * tm * C * jnp.dtype(out_dtype).itemsize
    acc = tm * C * 4
    return xb + wgb + w3b + ob + acc


def choose_i_tile(intermediate, target=None):
    """Largest 128-multiple I-tile <= target. The intermediate dim is padded to
    a multiple of it in prepare_swiglu_weights (never a full-I fallback)."""
    if target is None:
        target = _generation_tiling()["ti_target"]
    assert target % 128 == 0
    return min(target, _round_up(intermediate, 128))


# ---------------------------------------------------------------------------
# One-time weight preparation (outside the per-step call path)
# ---------------------------------------------------------------------------
def prepare_swiglu_weights(w1, w2, w3, ti, dtype=None):
    """w1, w2: (I, C); w3: (C, I) in nn.Linear (out, in) layout.

    Pads the intermediate dim to a multiple of `ti` (zero padding is exact:
    silu(0)*0 == 0 and the padded W3^T rows are zero), then returns:
      wg : (C, 2*Ip)  W1^T / W2^T columns interleaved per I-tile of width ti,
                      so block j (shape (C, 2*ti)) holds [W1^T tile_j | W2^T tile_j].
      w3t: (Ip, C)    W3^T.
    """
    I, C = w1.shape
    assert w2.shape == (I, C) and w3.shape == (C, I)
    assert ti % 128 == 0
    Ip = _round_up(I, ti)
    if Ip != I:
        pad = Ip - I
        w1 = jnp.pad(w1, ((0, pad), (0, 0)))
        w2 = jnp.pad(w2, ((0, pad), (0, 0)))
        w3 = jnp.pad(w3, ((0, 0), (0, pad)))
    n_tiles = Ip // ti
    w1t = jnp.transpose(w1).reshape(C, n_tiles, ti)
    w2t = jnp.transpose(w2).reshape(C, n_tiles, ti)
    wg = jnp.concatenate([w1t, w2t], axis=2).reshape(C, 2 * Ip)
    w3t = jnp.transpose(w3)
    if dtype is not None:
        wg = wg.astype(dtype)
        w3t = w3t.astype(dtype)
    return wg, w3t


# ---------------------------------------------------------------------------
# Wrapper
# ---------------------------------------------------------------------------
def swiglu_mlp(x, wg, w3t, *, ti, tm=None, out_dtype=None,
               vmem_limit_bytes=None, weight_buffers=None):
    """x: (B, T, C); wg: (C, 2*Ip) from prepare_swiglu_weights(ti=ti); w3t: (Ip, C)."""
    B, T, C = x.shape
    Ip = w3t.shape[0]
    assert wg.shape == (C, 2 * Ip) and Ip % ti == 0 and ti % 128 == 0

    out_dtype = jnp.dtype(x.dtype) if out_dtype is None else jnp.dtype(out_dtype)
    gen = _generation_tiling()
    if vmem_limit_bytes is None:
        vmem_limit_bytes = gen["vmem_limit"]

    M = B * T
    # dtype-aware sublane alignment for the tm (M) dimension:
    # 8 rows/vreg for f32, 16 for bf16, 32 for int8 (stricter of x / out dtypes).
    m_align = max(32 // jnp.dtype(x.dtype).itemsize,
                  32 // jnp.dtype(out_dtype).itemsize, 8)

    if tm is None:
        tm = min(gen["tm_target"], _round_up(M, m_align))
        # Shrink tm until the double-buffered blocks + f32 accumulator leave
        # headroom under the scoped VMEM limit.
        while (tm > m_align and
               _vmem_block_bytes(tm, ti, C, x.dtype, wg.dtype, out_dtype)
               > int(0.8 * vmem_limit_bytes)):
            tm = max(m_align, _round_up(tm // 2, m_align))
        if gen["two_core"] and M > m_align and tm >= _round_up(M, m_align):
            # v7x has 2 TensorCores: give the "parallel" M axis >= 2 tiles
            # when M permits so decode-sized batches use both cores.
            tm = max(m_align, _round_up(-(-M // 2), m_align))
    assert tm % m_align == 0, (tm, m_align)

    Mp = _round_up(M, tm)
    x2d = x.reshape(M, C)                 # native dtype; cast happens in-kernel
    if Mp != M:
        x2d = jnp.pad(x2d, ((0, Mp - M), (0, 0)))

    grid = (Mp // tm, Ip // ti)

    # Weights are re-streamed once per M tile — count that in bytes_accessed.
    w_bytes = (wg.size + w3t.size) * jnp.dtype(wg.dtype).itemsize
    cost = pl.CostEstimate(
        flops=6 * Mp * C * Ip,            # up-proj (2*M*C*2I) + down-proj (2*M*I*C)
        transcendentals=Mp * Ip,          # sigmoid
        bytes_accessed=(Mp * C * jnp.dtype(x.dtype).itemsize
                        + grid[0] * w_bytes
                        + Mp * C * jnp.dtype(out_dtype).itemsize),
    )

    # Optional deeper buffering for the weight streams only (v6e DMA-jitter knob).
    wg_kwargs = {}
    w3_kwargs = {}
    if weight_buffers is not None:
        wg_kwargs = dict(pipeline_mode=pl.Buffered(weight_buffers))
        w3_kwargs = dict(pipeline_mode=pl.Buffered(weight_buffers))

    out2d = pl.pallas_call(
        _swiglu_kernel,
        out_shape=jax.ShapeDtypeStruct((Mp, C), out_dtype),
        grid_spec=pltpu.PrefetchScalarGridSpec(
            num_scalar_prefetch=0,
            grid=grid,
            in_specs=[
                pl.BlockSpec((tm, C), lambda i, j: (i, 0)),                    # activations
                pl.BlockSpec((C, 2 * ti), lambda i, j: (0, j), **wg_kwargs),   # [W1^T | W2^T] tile
                pl.BlockSpec((ti, C), lambda i, j: (j, 0), **w3_kwargs),       # W3^T tile
            ],
            out_specs=pl.BlockSpec((tm, C), lambda i, j: (i, 0)),
            scratch_shapes=[pltpu.VMEM((tm, C), jnp.float32)],
        ),
        compiler_params=pltpu.CompilerParams(
            dimension_semantics=("parallel", "arbitrary"),
            vmem_limit_bytes=int(vmem_limit_bytes),
        ),
        cost_estimate=cost,
    )(x2d, wg, w3t)

    return out2d[:M].reshape(B, T, C)


def _reference(x, w1, w2, w3):
    x1 = jnp.einsum("btc,ic->bti", x, w1)
    x2 = jnp.einsum("btc,ic->bti", x, w2)
    h = jax.nn.silu(x1) * x2
    return jnp.einsum("bti,ci->btc", h, w3)


if __name__ == "__main__":
    # Small, module-consistent shapes: batch=2, seq=16, n_embd=128, intermediate=256.
    # TODO(synk): this kernel covers the LLaMAMLP (SwiGLU) sub-module of TransEncoder;
    # the embedding, RoPE self-attention (flex-attention block mask), norms and lm_head
    # are not reimplemented here.
    B, T, n_embd, intermediate = 2, 16, 128, 256

    key = jax.random.PRNGKey(0)
    kx, k1, k2, k3 = jax.random.split(key, 4)

    x = jax.random.normal(kx, (B, T, n_embd), dtype=jnp.float32)
    # nn.Linear-style weight shapes: (out_features, in_features)
    w1 = jax.random.normal(k1, (intermediate, n_embd), dtype=jnp.float32) * 0.05
    w2 = jax.random.normal(k2, (intermediate, n_embd), dtype=jnp.float32) * 0.05
    w3 = jax.random.normal(k3, (n_embd, intermediate), dtype=jnp.float32) * 0.05

    ref = _reference(x, w1, w2, w3)

    # 1) f32, generation-default tile sizes (single tile at these toy shapes).
    ti = choose_i_tile(intermediate)
    wg, w3t = prepare_swiglu_weights(w1, w2, w3, ti)
    out = jax.block_until_ready(swiglu_mlp(x, wg, w3t, ti=ti))
    assert out.shape == (B, T, n_embd)
    assert jnp.allclose(out, ref, atol=2e-3, rtol=2e-3), "f32 mismatch vs reference"

    # 2) f32, forced small tiles -> exercises the (M parallel, I reduction) grid
    #    with the resident accumulator: grid = (2, 2).
    ti_s = 128
    wg_s, w3t_s = prepare_swiglu_weights(w1, w2, w3, ti_s)
    out_s = jax.block_until_ready(swiglu_mlp(x, wg_s, w3t_s, ti=ti_s, tm=16))
    assert jnp.allclose(out_s, ref, atol=2e-3, rtol=2e-3), "tiled mismatch vs reference"

    # 3) Intermediate size that is NOT a multiple of the I tile -> zero-pad path.
    intermediate_odd = 200
    w1o = jax.random.normal(k1, (intermediate_odd, n_embd), dtype=jnp.float32) * 0.05
    w2o = jax.random.normal(k2, (intermediate_odd, n_embd), dtype=jnp.float32) * 0.05
    w3o = jax.random.normal(k3, (n_embd, intermediate_odd), dtype=jnp.float32) * 0.05
    ref_o = _reference(x, w1o, w2o, w3o)
    ti_o = choose_i_tile(intermediate_odd, target=128)
    wg_o, w3t_o = prepare_swiglu_weights(w1o, w2o, w3o, ti_o)
    out_o = jax.block_until_ready(swiglu_mlp(x, wg_o, w3t_o, ti=ti_o))
    assert jnp.allclose(out_o, ref_o, atol=2e-3, rtol=2e-3), "padded-I mismatch vs reference"

    # 4) bf16 weights (MXU-peak path), f32 activations cast in-kernel, bf16 output,
    #    f32 accumulation; looser tolerance.
    wg_b, w3t_b = prepare_swiglu_weights(w1, w2, w3, ti, dtype=jnp.bfloat16)
    out_b = jax.block_until_ready(
        swiglu_mlp(x, wg_b, w3t_b, ti=ti, out_dtype=jnp.bfloat16))
    assert jnp.allclose(out_b.astype(jnp.float32), ref, atol=5e-2, rtol=5e-2), \
        "bf16 mismatch vs reference"

    print("KERNEL_OK")
</pallas_src>

<mosaic_0001>
module attributes {stable_mosaic.version = 11 : i64} {
  func.func @_swiglu_kernel(%arg0: i32, %arg1: i32, %arg2: memref<32x128xf32, #tpu.memory_space<vmem>>, %arg3: memref<128x512xf32, #tpu.memory_space<vmem>>, %arg4: memref<256x128xf32, #tpu.memory_space<vmem>>, %arg5: memref<32x128xf32, #tpu.memory_space<vmem>>, %arg6: memref<32x128xf32, #tpu.memory_space<vmem>>) attributes {dimension_semantics = [#tpu.dimension_semantics<parallel>, #tpu.dimension_semantics<arbitrary>], iteration_bounds = array<i64: 1, 1>, scalar_prefetch = 0 : i64, scratch_operands = 1 : i64, tpu.core_type = #tpu.core_type<tc>, window_params = [{transform_indices = @transform_0, window_bounds = array<i64: 32, 128>}, {transform_indices = @transform_1, window_bounds = array<i64: 128, 512>}, {transform_indices = @transform_2, window_bounds = array<i64: 256, 128>}, {transform_indices = @transform_3, window_bounds = array<i64: 32, 128>}]} {
    %c0_i32 = arith.constant 0 : i32
    %0 = arith.cmpi eq, %arg1, %c0_i32 : i32
    %1 = arith.extui %0 : i1 to i32
    %c0_i32_0 = arith.constant 0 : i32
    %2 = arith.cmpi ne, %1, %c0_i32_0 : i32
    scf.if %2 {
      %cst_14 = arith.constant 0.000000e+00 : f32
      %23 = vector.broadcast %cst_14 : f32 to vector<32x128xf32>
      %c0_15 = arith.constant 0 : index
      %c0_16 = arith.constant 0 : index
      %24 = vector.load %arg6[%c0_15, %c0_16] : memref<32x128xf32, #tpu.memory_space<vmem>>, vector<32x128xf32>
      tpu.vector_store %arg6[%c0_15, %c0_16], %23 {strides = array<i32>} : memref<32x128xf32, #tpu.memory_space<vmem>>, vector<32x128xf32>,
    } else {
    }
    %c0 = arith.constant 0 : index
    %c0_1 = arith.constant 0 : index
    %3 = vector.load %arg2[%c0, %c0_1] : memref<32x128xf32, #tpu.memory_space<vmem>>, vector<32x128xf32>
    %c0_2 = arith.constant 0 : index
    %c0_3 = arith.constant 0 : index
    %4 = vector.load %arg3[%c0_2, %c0_3] : memref<128x512xf32, #tpu.memory_space<vmem>>, vector<128x512xf32>
    %cst = arith.constant dense<0.000000e+00> : vector<32x512xf32>
    %5 = tpu.matmul %3, %4, %cst {dimension_numbers = #tpu.dot_dimension_numbers<[1], [0], [0], [1], [0, 0, 1, 1], [], []>} : vector<32x128xf32>, vector<128x512xf32>, vector<32x512xf32> -> vector<32x512xf32>
    %6 = vector.extract_strided_slice %5 {offsets = [0, 0], sizes = [32, 256], strides = [1, 1]} : vector<32x512xf32> to vector<32x256xf32>
    %7 = vector.extract_strided_slice %5 {offsets = [0, 256], sizes = [32, 256], strides = [1, 1]} : vector<32x512xf32> to vector<32x256xf32>
    %8 = arith.negf %6 : vector<32x256xf32>
    %9 = math.exp %8 : vector<32x256xf32>
    %cst_4 = arith.constant 1.000000e+00 : f32
    %10 = vector.broadcast %cst_4 : f32 to vector<32x256xf32>
    %11 = arith.addf %10, %9 : vector<32x256xf32>
    %12 = arith.divf %10, %11 : vector<32x256xf32>
    %13 = arith.mulf %6, %12 : vector<32x256xf32>
    %14 = arith.mulf %13, %7 : vector<32x256xf32>
    %c0_5 = arith.constant 0 : index
    %c0_6 = arith.constant 0 : index
    %15 = vector.load %arg6[%c0_5, %c0_6] : memref<32x128xf32, #tpu.memory_space<vmem>>, vector<32x128xf32>
    %c0_7 = arith.constant 0 : index
    %c0_8 = arith.constant 0 : index
    %16 = vector.load %arg4[%c0_7, %c0_8] : memref<256x128xf32, #tpu.memory_space<vmem>>, vector<256x128xf32>
    %cst_9 = arith.constant dense<0.000000e+00> : vector<32x128xf32>
    %17 = tpu.matmul %14, %16, %cst_9 {dimension_numbers = #tpu.dot_dimension_numbers<[1], [0], [0], [1], [0, 0, 1, 1], [], []>} : vector<32x256xf32>, vector<256x128xf32>, vector<32x128xf32> -> vector<32x128xf32>
    %18 = arith.addf %15, %17 : vector<32x128xf32>
    %c0_10 = arith.constant 0 : index
    %c0_11 = arith.constant 0 : index
    %19 = vector.load %arg6[%c0_10, %c0_11] : memref<32x128xf32, #tpu.memory_space<vmem>>, vector<32x128xf32>
    tpu.vector_store %arg6[%c0_10, %c0_11], %18 {strides = array<i32>} : memref<32x128xf32, #tpu.memory_space<vmem>>, vector<32x128xf32>,
    %c0_i32_12 = arith.constant 0 : i32
    %20 = arith.cmpi eq, %arg1, %c0_i32_12 : i32
    %21 = arith.extui %20 : i1 to i32
    %c0_i32_13 = arith.constant 0 : i32
    %22 = arith.cmpi ne, %21, %c0_i32_13 : i32
    scf.if %22 {
      %c0_14 = arith.constant 0 : index
      %c0_15 = arith.constant 0 : index
      %23 = vector.load %arg6[%c0_14, %c0_15] : memref<32x128xf32, #tpu.memory_space<vmem>>, vector<32x128xf32>
      %c0_16 = arith.constant 0 : index
      %c0_17 = arith.constant 0 : index
      %24 = vector.load %arg5[%c0_16, %c0_17] : memref<32x128xf32, #tpu.memory_space<vmem>>, vector<32x128xf32>
      tpu.vector_store %arg5[%c0_16, %c0_17], %23 {strides = array<i32>} : memref<32x128xf32, #tpu.memory_space<vmem>>, vector<32x128xf32>,
    } else {
    }
    return
  }
  func.func @transform_0(%arg0: i32, %arg1: i32) -> (i32, i32) {
    %c0_i32 = arith.constant 0 : i32
    %c0_i32_0 = arith.constant 0 : i32
    return %arg0, %c0_i32 : i32, i32
  }
  func.func @transform_1(%arg0: i32, %arg1: i32) -> (i32, i32) {
    %c0_i32 = arith.constant 0 : i32
    %c0_i32_0 = arith.constant 0 : i32
    return %c0_i32, %arg1 : i32, i32
  }
  func.func @transform_2(%arg0: i32, %arg1: i32) -> (i32, i32) {
    %c0_i32 = arith.constant 0 : i32
    %c0_i32_0 = arith.constant 0 : i32
    return %arg1, %c0_i32 : i32, i32
  }
  func.func @transform_3(%arg0: i32, %arg1: i32) -> (i32, i32) {
    %c0_i32 = arith.constant 0 : i32
    %c0_i32_0 = arith.constant 0 : i32
    return %arg0, %c0_i32 : i32, i32
  }
}

</mosaic_0001>

<llo_original>
// kernel: tpu_custom_call.1
$region0: #{tpu_custom_call.1}
  #allocation0 [shape = 'u32[]', space=smem, size = 0x4, offset = 0x4, fixed_abs, tag = 'smem constant byte address 0x4 - core index']
  #allocation1 [shape = 'u32[144,128]{1,0:T(1,128)}', space=vmem, size = 0x12000, scoped, tag = 'internal scratch']
  #allocation2 [shape = 'f32[32,128]{1,0:T(8,128)}', space=vmem, size = 0x4000, scoped, tag = 'scratch operand']
  %s0 = inlined_call_operand.hbm [shape: f32[32,128], index: 0, kind: input, shape index: {}]
  %s1 = inlined_call_operand.hbm [shape: f32[128,512], index: 1, kind: input, shape index: {}]
  %s2 = inlined_call_operand.hbm [shape: f32[256,128], index: 2, kind: input, shape index: {}]
  %s3 = inlined_call_operand.hbm [shape: f32[32,128], index: 3, kind: output, shape index: {}]
  %s4 = sld [smem:[#allocation0]]
  $region42: #{tpu_custom_call.1} parent=0
    _
  %s6 = ssub.s32 1, %s4
  %s7 = scalar_select 0, %s6, %s4
  $region1: #{tpu_custom_call.1} parent=0
    #allocation3 [shape = 'u8[16384]{0}', space=vmem, size = 0x4000, scoped, tag = 'input window, operand 0, single buffered']
    #allocation4 [shape = 's32[1]{0}', space=sflag, size = 0x4, scoped, tag = 'scoped memory for tpu_custom_call.1']
    #allocation5 [shape = 's32[1]{0}', space=sflag, size = 0x4, scoped, tag = 'scoped memory for tpu_custom_call.1']
    #allocation6 [shape = 'u8[262144]{0}', space=vmem, size = 0x40000, scoped, tag = 'input window, operand 1, single buffered']
    #allocation7 [shape = 's32[1]{0}', space=sflag, size = 0x4, scoped, tag = 'scoped memory for tpu_custom_call.1']
    #allocation8 [shape = 'u8[131072]{0}', space=vmem, size = 0x20000, scoped, tag = 'input window, operand 2, single buffered']
    #allocation9 [shape = 'u8[16384]{0}', space=vmem, size = 0x4000, scoped, tag = 'output window, operand 0, single buffered']
    %8 = vsyncpa [#allocation4], 0
    %9 = vsyncpa [#allocation7], 0
    %10 = vsyncpa [#allocation5], 0
    // Predicated region
    $region2: #{tpu_custom_call.1} parent=1 // pred_check
      _
    $region3: #{tpu_custom_call.1} parent=1 // pred_check_branch
      %12 = sbr.rel (0) target = $region5
    $region4: #{tpu_custom_call.1} parent=1 // pred_region
      %s14 = ssub.s32 512, 512
      %15 = vsyncadd [#allocation4], %s14
      %s16 = sshll.u32 [#allocation3], 4
      %s17 = int_to_ptr.vmem [resolvable:$true] %s16
      %22 = dma.hbm_to_vmem [thread:$0]  %s0, 512, %s17, [#allocation4], 128, 128, 8
    $region5: #{tpu_custom_call.1} parent=1 // pred_fallthru
      _
    // Predicated region
    $region6: #{tpu_custom_call.1} parent=1 // pred_check
      _
    $region7: #{tpu_custom_call.1} parent=1 // pred_check_branch
      %24 = sbr.rel (0) target = $region9
    $region8: #{tpu_custom_call.1} parent=1 // pred_region
      %s26 = ssub.s32 8192, 8192
      %27 = vsyncadd [#allocation7], %s26
      %s28 = sshll.u32 [#allocation6], 4
      %s29 = int_to_ptr.vmem [resolvable:$true] %s28
      %34 = dma.hbm_to_vmem [thread:$0]  %s1, 8192, %s29, [#allocation7], 512, 512, 32
    $region9: #{tpu_custom_call.1} parent=1 // pred_fallthru
      _
    // Predicated region
    $region10: #{tpu_custom_call.1} parent=1 // pred_check
      _
    $region11: #{tpu_custom_call.1} parent=1 // pred_check_branch
      %36 = sbr.rel (0) target = $region13
    $region12: #{tpu_custom_call.1} parent=1 // pred_region
      %s38 = ssub.s32 4096, 4096
      %39 = vsyncadd [#allocation7], %s38
      %s40 = sshll.u32 [#allocation8], 4
      %s41 = int_to_ptr.vmem [resolvable:$true] %s40
      %46 = dma.hbm_to_vmem [thread:$0]  %s2, 4096, %s41, [#allocation7], 128, 128, 8
    $region13: #{tpu_custom_call.1} parent=1 // pred_fallthru
      _
    // Predicated region
    $region14: #{tpu_custom_call.1} parent=1 // pred_check
      _
    $region15: #{tpu_custom_call.1} parent=1 // pred_check_branch
      %48 = sbr.rel (0) target = $region17
    $region16: #{tpu_custom_call.1} parent=1 // pred_region
      %49 = dma.done [#allocation4], 512
    $region17: #{tpu_custom_call.1} parent=1 // pred_fallthru
      _
    // Predicated region
    $region18: #{tpu_custom_call.1} parent=1 // pred_check
      _
    $region19: #{tpu_custom_call.1} parent=1 // pred_check_branch
      %51 = sbr.rel (0) target = $region21
    $region20: #{tpu_custom_call.1} parent=1 // pred_region
      %52 = dma.done [#allocation7], 8192
    $region21: #{tpu_custom_call.1} parent=1 // pred_fallthru
      _
    // Predicated region
    $region22: #{tpu_custom_call.1} parent=1 // pred_check
      _
    $region23: #{tpu_custom_call.1} parent=1 // pred_check_branch
      %54 = sbr.rel (0) target = $region25
    $region24: #{tpu_custom_call.1} parent=1 // pred_region
      %55 = dma.done [#allocation7], 4096
    $region25: #{tpu_custom_call.1} parent=1 // pred_fallthru
      _
    %p56 = scmp.eq.s32.totalorder 0, 0
    // Predicated region
    $region26: #{tpu_custom_call.1} parent=1 // pred_check
      %p57 = pneg %p56
    $region27: #{tpu_custom_call.1} parent=1 // pred_check_branch
      %59 = sbr.rel (%p57) target = $region29
    $region28: #{tpu_custom_call.1} parent=1 // pred_region
      %60 = vst [vmem:[#allocation2] sm:$0xff] 0.0
      %61 = vst [vmem:[#allocation2 + $0x8] sm:$0xff] 0.0
      %62 = vst [vmem:[#allocation2 + $0x10] sm:$0xff] 0.0
      %63 = vst [vmem:[#allocation2 + $0x18] sm:$0xff] 0.0
    $region29: #{tpu_custom_call.1} parent=1 // pred_fallthru
      _
    %v64 = vld [vmem:[#allocation3] sm:$0xff]
    %v65 = vld [vmem:[#allocation3 + $0x8] sm:$0xff]
    %v66 = vld [vmem:[#allocation3 + $0x10] sm:$0xff]
    %v67 = vld [vmem:[#allocation3 + $0x18] sm:$0xff]
    %v68 = vld [vmem:[#allocation6] sm:$0xff]
    %v69 = vld [vmem:[#allocation6 + $0x8] sm:$0xff]
    %v70 = vld [vmem:[#allocation6 + $0x10] sm:$0xff]
    %v71 = vld [vmem:[#allocation6 + $0x18] sm:$0xff]
    %v72 = vld [vmem:[#allocation6 + $0x20] sm:$0xff]
    %v73 = vld [vmem:[#allocation6 + $0x28] sm:$0xff]
    %v74 = vld [vmem:[#allocation6 + $0x30] sm:$0xff]
    %v75 = vld [vmem:[#allocation6 + $0x38] sm:$0xff]
    %v76 = vld [vmem:[#allocation6 + $0x40] sm:$0xff]
    %v77 = vld [vmem:[#allocation6 + $0x48] sm:$0xff]
    %v78 = vld [vmem:[#allocation6 + $0x50] sm:$0xff]
    %v79 = vld [vmem:[#allocation6 + $0x58] sm:$0xff]
    %v80 = vld [vmem:[#allocation6 + $0x60] sm:$0xff]
    %v81 = vld [vmem:[#allocation6 + $0x68] sm:$0xff]
    %v82 = vld [vmem:[#allocation6 + $0x70] sm:$0xff]
    %v83 = vld [vmem:[#allocation6 + $0x78] sm:$0xff]
    %v84 = vld [vmem:[#allocation6 + $0x80] sm:$0xff]
    %v85 = vld [vmem:[#allocation6 + $0x88] sm:$0xff]
    %v86 = vld [vmem:[#allocation6 + $0x90] sm:$0xff]
    %v87 = vld [vmem:[#allocation6 + $0x98] sm:$0xff]
    %v88 = vld [vmem:[#allocation6 + $0xa0] sm:$0xff]
    %v89 = vld [vmem:[#allocation6 + $0xa8] sm:$0xff]
    %v90 = vld [vmem:[#allocation6 + $0xb0] sm:$0xff]
    %v91 = vld [vmem:[#allocation6 + $0xb8] sm:$0xff]
    %v92 = vld [vmem:[#allocation6 + $0xc0] sm:$0xff]
    %v93 = vld [vmem:[#allocation6 + $0xc8] sm:$0xff]
    %v94 = vld [vmem:[#allocation6 + $0xd0] sm:$0xff]
    %v95 = vld [vmem:[#allocation6 + $0xd8] sm:$0xff]
    %v96 = vld [vmem:[#allocation6 + $0xe0] sm:$0xff]
    %v97 = vld [vmem:[#allocation6 + $0xe8] sm:$0xff]
    %v98 = vld [vmem:[#allocation6 + $0xf0] sm:$0xff]
    %v99 = vld [vmem:[#allocation6 + $0xf8] sm:$0xff]
    %v100 = vld [vmem:[#allocation6 + $0x100] sm:$0xff]
    %v101 = vld [vmem:[#allocation6 + $0x108] sm:$0xff]
    %v102 = vld [vmem:[#allocation6 + $0x110] sm:$0xff]
    %v103 = vld [vmem:[#allocation6 + $0x118] sm:$0xff]
    %v104 = vld [vmem:[#allocation6 + $0x120] sm:$0xff]
    %v105 = vld [vmem:[#allocation6 + $0x128] sm:$0xff]
    %v106 = vld [vmem:[#allocation6 + $0x130] sm:$0xff]
    %v107 = vld [vmem:[#allocation6 + $0x138] sm:$0xff]
    %v108 = vld [vmem:[#allocation6 + $0x140] sm:$0xff]
    %v109 = vld [vmem:[#allocation6 + $0x148] sm:$0xff]
    %v110 = vld [vmem:[#allocation6 + $0x150] sm:$0xff]
    %v111 = vld [vmem:[#allocation6 + $0x158] sm:$0xff]
    %v112 = vld [vmem:[#allocation6 + $0x160] sm:$0xff]
    %v113 = vld [vmem:[#allocation6 + $0x168] sm:$0xff]
    %v114 = vld [vmem:[#allocation6 + $0x170] sm:$0xff]
    %v115 = vld [vmem:[#allocation6 + $0x178] sm:$0xff]
    %v116 = vld [vmem:[#allocation6 + $0x180] sm:$0xff]
    %v117 = vld [vmem:[#allocation6 + $0x188] sm:$0xff]
    %v118 = vld [vmem:[#allocation6 + $0x190] sm:$0xff]
    %v119 = vld [vmem:[#allocation6 + $0x198] sm:$0xff]
    %v120 = vld [vmem:[#allocation6 + $0x1a0] sm:$0xff]
    %v121 = vld [vmem:[#allocation6 + $0x1a8] sm:$0xff]
    %v122 = vld [vmem:[#allocation6 + $0x1b0] sm:$0xff]
    %v123 = vld [vmem:[#allocation6 + $0x1b8] sm:$0xff]
    %v124 = vld [vmem:[#allocation6 + $0x1c0] sm:$0xff]
    %v125 = vld [vmem:[#allocation6 + $0x1c8] sm:$0xff]
    %v126 = vld [vmem:[#allocation6 + $0x1d0] sm:$0xff]
    %v127 = vld [vmem:[#allocation6 + $0x1d8] sm:$0xff]
    %v128 = vld [vmem:[#allocation6 + $0x1e0] sm:$0xff]
    %v129 = vld [vmem:[#allocation6 + $0x1e8] sm:$0xff]
    %v130 = vld [vmem:[#allocation6 + $0x1f0] sm:$0xff]
    %v131 = vld [vmem:[#allocation6 + $0x1f8] sm:$0xff]
    %132 = vmatprep.subr.mxu0 %v69
    %133 = vmatpush1.msra.mxu0 %v68
    %134 = vmatprep.subr.mxu0 %v73
    %135 = vmatpush1.msra.mxu0 %v72
    %136 = vmatprep.subr.mxu0 %v77
    %137 = vmatpush1.msra.mxu0 %v76
    %138 = vmatprep.subr.mxu0 %v81
    %139 = vmatpush1.msra.mxu0 %v80
    %140 = vmatprep.subr.mxu0 %v85
    %141 = vmatpush1.msra.mxu0 %v84
    %142 = vmatprep.subr.mxu0 %v89
    %143 = vmatpush1.msra.mxu0 %v88
    %144 = vmatprep.subr.mxu0 %v93
    %145 = vmatpush1.msra.mxu0 %v92
    %146 = vmatprep.subr.mxu0 %v97
    %147 = vmatpush1.msra.mxu0 %v96
    %148 = vmatprep.subr.mxu0 %v101
    %149 = vmatpush1.msra.mxu0 %v100
    %150 = vmatprep.subr.mxu0 %v105
    %151 = vmatpush1.msra.mxu0 %v104
    %152 = vmatprep.subr.mxu0 %v109
    %153 = vmatpush1.msra.mxu0 %v108
    %154 = vmatprep.subr.mxu0 %v113
    %155 = vmatpush1.msra.mxu0 %v112
    %156 = vmatprep.subr.mxu0 %v117
    %157 = vmatpush1.msra.mxu0 %v116
    %158 = vmatprep.subr.mxu0 %v121
    %159 = vmatpush1.msra.mxu0 %v120
    %160 = vmatprep.subr.mxu0 %v125
    %161 = vmatpush1.msra.mxu0 %v124
    %162 = vmatprep.subr.mxu0 %v129
    %163 = vmatpush1.msra.mxu0 %v128
    %164 = vmatprep.subr.mxu0 0.0
    %165 = vmatpush1.msra.mxu0 0.0
    %166 = vmatprep.subr.mxu0 0.0
    %167 = vmatpush1.msra.mxu0 0.0
    %168 = vmatprep.subr.mxu0 0.0
    %169 = vmatpush1.msra.mxu0 0.0
    %170 = vmatprep.subr.mxu0 0.0
    %171 = vmatpush1.msra.mxu0 0.0
    %172 = vmatprep.subr.mxu0 0.0
    %173 = vmatpush1.msra.mxu0 0.0
    %174 = vmatprep.subr.mxu0 0.0
    %175 = vmatpush1.msra.mxu0 0.0
    %176 = vmatprep.subr.mxu0 0.0
    %177 = vmatpush1.msra.mxu0 0.0
    %178 = vmatprep.subr.mxu0 0.0
    %179 = vmatpush1.msra.mxu0 0.0
    %180 = vmatprep.subr.mxu0 0.0
    %181 = vmatpush1.msra.mxu0 0.0
    %182 = vmatprep.subr.mxu0 0.0
    %183 = vmatpush1.msra.mxu0 0.0
    %184 = vmatprep.subr.mxu0 0.0
    %185 = vmatpush1.msra.mxu0 0.0
    %186 = vmatprep.subr.mxu0 0.0
    %187 = vmatpush1.msra.mxu0 0.0
    %188 = vmatprep.subr.mxu0 0.0
    %189 = vmatpush1.msra.mxu0 0.0
    %190 = vmatprep.subr.mxu0 0.0
    %191 = vmatpush1.msra.mxu0 0.0
    %192 = vmatprep.subr.mxu0 0.0
    %193 = vmatpush1.msra.mxu0 0.0
    %194 = vmatprep.subr.mxu0 0.0
    %195 = vmatpush1.msra.mxu0 0.0
    %196 = vmatprep.mubr.f32.mxu0 0.0
    %197 = vmatmul.mubr.f32.gmra.mrb[0].mxu0 %v64
    %v198 = vpop.f32.mrb[0].mxu0
    %v199 = vadd.f32 0.0, %v198
    %v200 = vpop.f32.mrb[0].mxu0
    %v201 = vadd.f32 0.0, %v200
    %202 = vmatprep.mubr.f32.mxu0 0.0
    %203 = vmatmul.mubr.f32.gmra.mrb[0].mxu0 %v65
    %v204 = vpop.f32.mrb[0].mxu0
    %v205 = vadd.f32 0.0, %v204
    %v206 = vpop.f32.mrb[0].mxu0
    %v207 = vadd.f32 0.0, %v206
    %208 = vmatprep.mubr.f32.mxu0 0.0
    %209 = vmatmul.mubr.f32.gmra.mrb[0].mxu0 %v66
    %v210 = vpop.f32.mrb[0].mxu0
    %v211 = vadd.f32 0.0, %v210
    %v212 = vpop.f32.mrb[0].mxu0
    %v213 = vadd.f32 0.0, %v212
    %214 = vmatprep.mubr.f32.mxu0 0.0
    %215 = vmatmul.mubr.f32.gmra.mrb[0].mxu0 %v67
    %v216 = vpop.f32.mrb[0].mxu0
    %v217 = vadd.f32 0.0, %v216
    %v218 = vpop.f32.mrb[0].mxu0
    %v219 = vadd.f32 0.0, %v218
    %220 = vdwg.mxu0
    %221 = vmatprep.subr.mxu0 %v71
    %222 = vmatpush1.msra.mxu0 %v70
    %223 = vmatprep.subr.mxu0 %v75
    %224 = vmatpush1.msra.mxu0 %v74
    %225 = vmatprep.subr.mxu0 %v79
    %226 = vmatpush1.msra.mxu0 %v78
    %227 = vmatprep.subr.mxu0 %v83
    %228 = vmatpush1.msra.mxu0 %v82
    %229 = vmatprep.subr.mxu0 %v87
    %230 = vmatpush1.msra.mxu0 %v86
    %231 = vmatprep.subr.mxu0 %v91
    %232 = vmatpush1.msra.mxu0 %v90
    %233 = vmatprep.subr.mxu0 %v95
    %234 = vmatpush1.msra.mxu0 %v94
    %235 = vmatprep.subr.mxu0 %v99
    %236 = vmatpush1.msra.mxu0 %v98
    %237 = vmatprep.subr.mxu0 %v103
    %238 = vmatpush1.msra.mxu0 %v102
    %239 = vmatprep.subr.mxu0 %v107
    %240 = vmatpush1.msra.mxu0 %v106
    %241 = vmatprep.subr.mxu0 %v111
    %242 = vmatpush1.msra.mxu0 %v110
    %243 = vmatprep.subr.mxu0 %v115
    %244 = vmatpush1.msra.mxu0 %v114
    %245 = vmatprep.subr.mxu0 %v119
    %246 = vmatpush1.msra.mxu0 %v118
    %247 = vmatprep.subr.mxu0 %v123
    %248 = vmatpush1.msra.mxu0 %v122
    %249 = vmatprep.subr.mxu0 %v127
    %250 = vmatpush1.msra.mxu0 %v126
    %251 = vmatprep.subr.mxu0 %v131
    %252 = vmatpush1.msra.mxu0 %v130
    %253 = vmatprep.subr.mxu0 0.0
    %254 = vmatpush1.msra.mxu0 0.0
    %255 = vmatprep.subr.mxu0 0.0
    %256 = vmatpush1.msra.mxu0 0.0
    %257 = vmatprep.subr.mxu0 0.0
    %258 = vmatpush1.msra.mxu0 0.0
    %259 = vmatprep.subr.mxu0 0.0
    %260 = vmatpush1.msra.mxu0 0.0
    %261 = vmatprep.subr.mxu0 0.0
    %262 = vmatpush1.msra.mxu0 0.0
    %263 = vmatprep.subr.mxu0 0.0
    %264 = vmatpush1.msra.mxu0 0.0
    %265 = vmatprep.subr.mxu0 0.0
    %266 = vmatpush1.msra.mxu0 0.0
    %267 = vmatprep.subr.mxu0 0.0
    %268 = vmatpush1.msra.mxu0 0.0
    %269 = vmatprep.subr.mxu0 0.0
    %270 = vmatpush1.msra.mxu0 0.0
    %271 = vmatprep.subr.mxu0 0.0
    %272 = vmatpush1.msra.mxu0 0.0
    %273 = vmatprep.subr.mxu0 0.0
    %274 = vmatpush1.msra.mxu0 0.0
    %275 = vmatprep.subr.mxu0 0.0
    %276 = vmatpush1.msra.mxu0 0.0
    %277 = vmatprep.subr.mxu0 0.0
    %278 = vmatpush1.msra.mxu0 0.0
    %279 = vmatprep.subr.mxu0 0.0
    %280 = vmatpush1.msra.mxu0 0.0
    %281 = vmatprep.subr.mxu0 0.0
    %282 = vmatpush1.msra.mxu0 0.0
    %283 = vmatprep.subr.mxu0 0.0
    %284 = vmatpush1.msra.mxu0 0.0
    %285 = vmatprep.mubr.f32.mxu0 0.0
    %286 = vmatmul.mubr.f32.gmra.mrb[0].mxu0 %v64
    %v287 = vpop.f32.mrb[0].mxu0
    %v288 = vadd.f32 0.0, %v287
    %v289 = vpop.f32.mrb[0].mxu0
    %v290 = vadd.f32 0.0, %v289
    %291 = vmatprep.mubr.f32.mxu0 0.0
    %292 = vmatmul.mubr.f32.gmra.mrb[0].mxu0 %v65
    %v293 = vpop.f32.mrb[0].mxu0
    %v294 = vadd.f32 0.0, %v293
    %v295 = vpop.f32.mrb[0].mxu0
    %v296 = vadd.f32 0.0, %v295
    %297 = vmatprep.mubr.f32.mxu0 0.0
    %298 = vmatmul.mubr.f32.gmra.mrb[0].mxu0 %v66
    %v299 = vpop.f32.mrb[0].mxu0
    %v300 = vadd.f32 0.0, %v299
    %v301 = vpop.f32.mrb[0].mxu0
    %v302 = vadd.f32 0.0, %v301
    %303 = vmatprep.mubr.f32.mxu0 0.0
    %304 = vmatmul.mubr.f32.gmra.mrb[0].mxu0 %v67
    %v305 = vpop.f32.mrb[0].mxu0
    %v306 = vadd.f32 0.0, %v305
    %v307 = vpop.f32.mrb[0].mxu0
    %v308 = vadd.f32 0.0, %v307
    %309 = vdwg.mxu0
    %v310 = vxor.u32 %v199, 2147483648
    %v311 = vxor.u32 %v201, 2147483648
    %v312 = vxor.u32 %v205, 2147483648
    %v313 = vxor.u32 %v207, 2147483648
    %v314 = vxor.u32 %v211, 2147483648
    %v315 = vxor.u32 %v213, 2147483648
    %v316 = vxor.u32 %v217, 2147483648
    %v317 = vxor.u32 %v219, 2147483648
    %v318 = vmul.f32 %v310, 1.442695
    %v319 = vpow.pop %v318
    %v320 = vmul.f32 %v311, 1.442695
    %v321 = vpow.pop %v320
    %v322 = vmul.f32 %v312, 1.442695
    %v323 = vpow.pop %v322
    %v324 = vmul.f32 %v313, 1.442695
    %v325 = vpow.pop %v324
    %v326 = vmul.f32 %v314, 1.442695
    %v327 = vpow.pop %v326
    %v328 = vmul.f32 %v315, 1.442695
    %v329 = vpow.pop %v328
    %v330 = vmul.f32 %v316, 1.442695
    %v331 = vpow.pop %v330
    %v332 = vmul.f32 %v317, 1.442695
    %v333 = vpow.pop %v332
    %v334 = vadd.f32 %v319, 1.0
    %v335 = vadd.f32 %v321, 1.0
    %v336 = vadd.f32 %v323, 1.0
    %v337 = vadd.f32 %v325, 1.0
    %v338 = vadd.f32 %v327, 1.0
    %v339 = vadd.f32 %v329, 1.0
    %v340 = vadd.f32 %v331, 1.0
    %v341 = vadd.f32 %v333, 1.0
    %v342 = vrcp.pop %v334
    %v343 = vmul.f32 1.0, %v342
    %v344 = vrcp.pop %v335
    %v345 = vmul.f32 1.0, %v344
    %v346 = vrcp.pop %v336
    %v347 = vmul.f32 1.0, %v346
    %v348 = vrcp.pop %v337
    %v349 = vmul.f32 1.0, %v348
    %v350 = vrcp.pop %v338
    %v351 = vmul.f32 1.0, %v350
    %v352 = vrcp.pop %v339
    %v353 = vmul.f32 1.0, %v352
    %v354 = vrcp.pop %v340
    %v355 = vmul.f32 1.0, %v354
    %v356 = vrcp.pop %v341
    %v357 = vmul.f32 1.0, %v356
    %v358 = vmul.f32 %v199, %v343
    %v359 = vmul.f32 %v201, %v345
    %v360 = vmul.f32 %v205, %v347
    %v361 = vmul.f32 %v207, %v349
    %v362 = vmul.f32 %v211, %v351
    %v363 = vmul.f32 %v213, %v353
    %v364 = vmul.f32 %v217, %v355
    %v365 = vmul.f32 %v219, %v357
    %v366 = vmul.f32 %v358, %v288
    %v367 = vmul.f32 %v359, %v290
    %v368 = vmul.f32 %v360, %v294
    %v369 = vmul.f32 %v361, %v296
    %v370 = vmul.f32 %v362, %v300
    %v371 = vmul.f32 %v363, %v302
    %v372 = vmul.f32 %v364, %v306
    %v373 = vmul.f32 %v365, %v308
    %v374 = vld [vmem:[#allocation2] sm:$0xff]
    %v375 = vld [vmem:[#allocation2 + $0x8] sm:$0xff]
    %v376 = vld [vmem:[#allocation2 + $0x10] sm:$0xff]
    %v377 = vld [vmem:[#allocation2 + $0x18] sm:$0xff]
    %v378 = vld [vmem:[#allocation8] sm:$0xff]
    %v379 = vld [vmem:[#allocation8 + $0x8] sm:$0xff]
    %v380 = vld [vmem:[#allocation8 + $0x10] sm:$0xff]
    %v381 = vld [vmem:[#allocation8 + $0x18] sm:$0xff]
    %v382 = vld [vmem:[#allocation8 + $0x20] sm:$0xff]
    %v383 = vld [vmem:[#allocation8 + $0x28] sm:$0xff]
    %v384 = vld [vmem:[#allocation8 + $0x30] sm:$0xff]
    %v385 = vld [vmem:[#allocation8 + $0x38] sm:$0xff]
    %v386 = vld [vmem:[#allocation8 + $0x40] sm:$0xff]
    %v387 = vld [vmem:[#allocation8 + $0x48] sm:$0xff]
    %v388 = vld [vmem:[#allocation8 + $0x50] sm:$0xff]
    %v389 = vld [vmem:[#allocation8 + $0x58] sm:$0xff]
    %v390 = vld [vmem:[#allocation8 + $0x60] sm:$0xff]
    %v391 = vld [vmem:[#allocation8 + $0x68] sm:$0xff]
    %v392 = vld [vmem:[#allocation8 + $0x70] sm:$0xff]
    %v393 = vld [vmem:[#allocation8 + $0x78] sm:$0xff]
    %v394 = vld [vmem:[#allocation8 + $0x80] sm:$0xff]
    %v395 = vld [vmem:[#allocation8 + $0x88] sm:$0xff]
    %v396 = vld [vmem:[#allocation8 + $0x90] sm:$0xff]
    %v397 = vld [vmem:[#allocation8 + $0x98] sm:$0xff]
    %v398 = vld [vmem:[#allocation8 + $0xa0] sm:$0xff]
    %v399 = vld [vmem:[#allocation8 + $0xa8] sm:$0xff]
    %v400 = vld [vmem:[#allocation8 + $0xb0] sm:$0xff]
    %v401 = vld [vmem:[#allocation8 + $0xb8] sm:$0xff]
    %v402 = vld [vmem:[#allocation8 + $0xc0] sm:$0xff]
    %v403 = vld [vmem:[#allocation8 + $0xc8] sm:$0xff]
    %v404 = vld [vmem:[#allocation8 + $0xd0] sm:$0xff]
    %v405 = vld [vmem:[#allocation8 + $0xd8] sm:$0xff]
    %v406 = vld [vmem:[#allocation8 + $0xe0] sm:$0xff]
    %v407 = vld [vmem:[#allocation8 + $0xe8] sm:$0xff]
    %v408 = vld [vmem:[#allocation8 + $0xf0] sm:$0xff]
    %v409 = vld [vmem:[#allocation8 + $0xf8] sm:$0xff]
    %410 = vmatprep.subr.mxu0 0.0
    %411 = vmatpush1.msra.mxu0 %v378
    %412 = vmatprep.subr.mxu0 0.0
    %413 = vmatpush1.msra.mxu0 %v379
    %414 = vmatprep.subr.mxu0 0.0
    %415 = vmatpush1.msra.mxu0 %v380
    %416 = vmatprep.subr.mxu0 0.0
    %417 = vmatpush1.msra.mxu0 %v381
    %418 = vmatprep.subr.mxu0 0.0
    %419 = vmatpush1.msra.mxu0 %v382
    %420 = vmatprep.subr.mxu0 0.0
    %421 = vmatpush1.msra.mxu0 %v383
    %422 = vmatprep.subr.mxu0 0.0
    %423 = vmatpush1.msra.mxu0 %v384
    %424 = vmatprep.subr.mxu0 0.0
    %425 = vmatpush1.msra.mxu0 %v385
    %426 = vmatprep.subr.mxu0 0.0
    %427 = vmatpush1.msra.mxu0 %v386
    %428 = vmatprep.subr.mxu0 0.0
    %429 = vmatpush1.msra.mxu0 %v387
    %430 = vmatprep.subr.mxu0 0.0
    %431 = vmatpush1.msra.mxu0 %v388
    %432 = vmatprep.subr.mxu0 0.0
    %433 = vmatpush1.msra.mxu0 %v389
    %434 = vmatprep.subr.mxu0 0.0
    %435 = vmatpush1.msra.mxu0 %v390
    %436 = vmatprep.subr.mxu0 0.0
    %437 = vmatpush1.msra.mxu0 %v391
    %438 = vmatprep.subr.mxu0 0.0
    %439 = vmatpush1.msra.mxu0 %v392
    %440 = vmatprep.subr.mxu0 0.0
    %441 = vmatpush1.msra.mxu0 %v393
    %442 = vmatprep.subr.mxu0 0.0
    %443 = vmatpush1.msra.mxu0 %v394
    %444 = vmatprep.subr.mxu0 0.0
    %445 = vmatpush1.msra.mxu0 %v395
    %446 = vmatprep.subr.mxu0 0.0
    %447 = vmatpush1.msra.mxu0 %v396
    %448 = vmatprep.subr.mxu0 0.0
    %449 = vmatpush1.msra.mxu0 %v397
    %450 = vmatprep.subr.mxu0 0.0
    %451 = vmatpush1.msra.mxu0 %v398
    %452 = vmatprep.subr.mxu0 0.0
    %453 = vmatpush1.msra.mxu0 %v399
    %454 = vmatprep.subr.mxu0 0.0
    %455 = vmatpush1.msra.mxu0 %v400
    %456 = vmatprep.subr.mxu0 0.0
    %457 = vmatpush1.msra.mxu0 %v401
    %458 = vmatprep.subr.mxu0 0.0
    %459 = vmatpush1.msra.mxu0 %v402
    %460 = vmatprep.subr.mxu0 0.0
    %461 = vmatpush1.msra.mxu0 %v403
    %462 = vmatprep.subr.mxu0 0.0
    %463 = vmatpush1.msra.mxu0 %v404
    %464 = vmatprep.subr.mxu0 0.0
    %465 = vmatpush1.msra.mxu0 %v405
    %466 = vmatprep.subr.mxu0 0.0
    %467 = vmatpush1.msra.mxu0 %v406
    %468 = vmatprep.subr.mxu0 0.0
    %469 = vmatpush1.msra.mxu0 %v407
    %470 = vmatprep.subr.mxu0 0.0
    %471 = vmatpush1.msra.mxu0 %v408
    %472 = vmatprep.subr.mxu0 0.0
    %473 = vmatpush1.msra.mxu0 %v409
    %474 = vmatprep.mubr.f32.mxu0 %v367
    %475 = vmatmul.mubr.f32.gmra.mrb[0].mxu0 %v366
    %v476 = vpop.f32.mrb[0].mxu0
    %v477 = vadd.f32 0.0, %v476
    %v478 = vpop.f32.mrb[0].mxu0
    %479 = vmatprep.mubr.f32.mxu0 %v369
    %480 = vmatmul.mubr.f32.gmra.mrb[0].mxu0 %v368
    %v481 = vpop.f32.mrb[0].mxu0
    %v482 = vadd.f32 0.0, %v481
    %v483 = vpop.f32.mrb[0].mxu0
    %484 = vmatprep.mubr.f32.mxu0 %v371
    %485 = vmatmul.mubr.f32.gmra.mrb[0].mxu0 %v370
    %v486 = vpop.f32.mrb[0].mxu0
    %v487 = vadd.f32 0.0, %v486
    %v488 = vpop.f32.mrb[0].mxu0
    %489 = vmatprep.mubr.f32.mxu0 %v373
    %490 = vmatmul.mubr.f32.gmra.mrb[0].mxu0 %v372
    %v491 = vpop.f32.mrb[0].mxu0
    %v492 = vadd.f32 0.0, %v491
    %v493 = vpop.f32.mrb[0].mxu0
    %494 = vdwg.mxu0
    %v495 = vadd.f32 %v374, %v477
    %v496 = vadd.f32 %v375, %v482
    %v497 = vadd.f32 %v376, %v487
    %v498 = vadd.f32 %v377, %v492
    %499 = vst [vmem:[#allocation2] sm:$0xff] %v495
    %500 = vst [vmem:[#allocation2 + $0x8] sm:$0xff] %v496
    %501 = vst [vmem:[#allocation2 + $0x10] sm:$0xff] %v497
    %502 = vst [vmem:[#allocation2 + $0x18] sm:$0xff] %v498
    // Predicated region
    $region30: #{tpu_custom_call.1} parent=1 // pred_check
      %p503 = pneg %p56
    $region31: #{tpu_custom_call.1} parent=1 // pred_check_branch
      %505 = sbr.rel (%p503) target = $region33
    $region32: #{tpu_custom_call.1} parent=1 // pred_region
      %v506 = vld [vmem:[#allocation2] sm:$0xff]
      %v507 = vld [vmem:[#allocation2 + $0x8] sm:$0xff]
      %v508 = vld [vmem:[#allocation2 + $0x10] sm:$0xff]
      %v509 = vld [vmem:[#allocation2 + $0x18] sm:$0xff]
      %510 = vst [vmem:[#allocation9] sm:$0xff] %v506
      %511 = vst [vmem:[#allocation9 + $0x8] sm:$0xff] %v507
      %512 = vst [vmem:[#allocation9 + $0x10] sm:$0xff] %v508
      %513 = vst [vmem:[#allocation9 + $0x18] sm:$0xff] %v509
    $region33: #{tpu_custom_call.1} parent=1 // pred_fallthru
      _
    // Predicated region
    $region34: #{tpu_custom_call.1} parent=1 // pred_check
      _
    $region35: #{tpu_custom_call.1} parent=1 // pred_check_branch
      %515 = sbr.rel (0) target = $region37
    $region36: #{tpu_custom_call.1} parent=1 // pred_region
      %s517 = ssub.s32 512, 512
      %518 = vsyncadd [#allocation5], %s517
      %s519 = sshll.u32 [#allocation9], 4
      %s520 = int_to_ptr.vmem [resolvable:$true] %s519
      %525 = dma.vmem_to_hbm [thread:$0]  %s520, 512, %s3, [#allocation5], 128, 128, 8
    $region37: #{tpu_custom_call.1} parent=1 // pred_fallthru
      _
    // Predicated region
    $region38: #{tpu_custom_call.1} parent=1 // pred_check
      _
    $region39: #{tpu_custom_call.1} parent=1 // pred_check_branch
      %527 = sbr.rel (0) target = $region41
    $region40: #{tpu_custom_call.1} parent=1 // pred_region
      %528 = dma.done [#allocation5], 512
    $region41: #{tpu_custom_call.1} parent=1 // pred_fallthru
      _
    %529 = vsyncpa [#allocation4], 1
    %530 = vsyncpa [#allocation7], 1
    %531 = vsyncpa [#allocation5], 1

</llo_original>
